<compile_context>
chip_gen: v7x
topology: tpu7x:2x2x1
jax: 0.10.0
libtpu: 0.0.40
codegen_flags: <defaults>
</compile_context>

<pallas_src>
import functools

import jax
import jax.numpy as jnp
from jax.experimental import pallas as pl
from jax.experimental.pallas import tpu as pltpu


def _round_up(x, m):
    return (x + m - 1) // m * m


def _mbstd_kernel(x_ref, s_ref, acc_ref, *, chw, tn, alpha):
    # x_ref  : (B, TN) tile of the flattened (B, C*H*W) input.
    # s_ref  : (1, 1) f32 output scalar (mean over C,H,W of per-location std).
    # acc_ref: (1, TN) f32 running elementwise sum of per-location std.
    j = pl.program_id(0)

    @pl.when(j == 0)
    def _init():
        acc_ref[...] = jnp.zeros_like(acc_ref)

    xf = x_ref[...].astype(jnp.float32)                     # (B, TN)
    mu = jnp.mean(xf, axis=0, keepdims=True)                # (1, TN)
    d = xf - mu
    var = jnp.mean(d * d, axis=0, keepdims=True)            # biased (matches torch)
    std = jnp.sqrt(var + alpha)                             # (1, TN)

    # Mask lanes beyond the true C*H*W extent (partial last tile reads garbage).
    col = j * tn + jax.lax.broadcasted_iota(jnp.int32, std.shape, 1)
    std = jnp.where(col < chw, std, 0.0)

    acc_ref[...] += std                                     # pure VPU add per tile

    @pl.when(j == pl.num_programs(0) - 1)
    def _finalize():
        # Single cross-lane reduction, once.
        s_ref[...] = jnp.sum(acc_ref[...], axis=1, keepdims=True) * (1.0 / chw)


def minibatch_stddev(x, alpha=1e-8, *, tile_n=2048):
    """x: (B, C, H, W) -> (B, C+1, H, W); same semantics as the torch module."""
    B, C, H, W = x.shape
    chw = C * H * W

    # Lane-tile size: multiple of 128, capped by the (128-padded) problem size.
    tn = min(_round_up(tile_n, 128), _round_up(chw, 128))
    num_tiles = pl.cdiv(chw, tn)

    x2 = x.reshape(B, chw)  # free reshape (row-major), no copy

    s = pl.pallas_call(
        functools.partial(_mbstd_kernel, chw=chw, tn=tn, alpha=alpha),
        grid=(num_tiles,),
        in_specs=[pl.BlockSpec((B, tn), lambda j: (0, j))],
        out_specs=pl.BlockSpec((1, 1), lambda j: (0, 0)),
        out_shape=jax.ShapeDtypeStruct((1, 1), jnp.float32),
        scratch_shapes=[pltpu.VMEM((1, tn), jnp.float32)],
        compiler_params=pltpu.CompilerParams(
            dimension_semantics=("arbitrary",),  # scalar accumulator carries across tiles
        ),
    )(x2)

    extra = jnp.broadcast_to(s.reshape(()).astype(x.dtype), (B, 1, H, W))
    # The concatenate is the only full-size copy of x (unavoidable for the
    # channel-append semantics without writing the fused output layout by hand).
    return jnp.concatenate([x, extra], axis=1)


def _reference(x, alpha=1e-8):
    # pure-JAX reference reproducing the PyTorch forward
    y = x - jnp.mean(x, axis=0, keepdims=True)
    y = jnp.sqrt(jnp.mean(y ** 2.0, axis=0) + alpha)
    s = jnp.mean(y)
    extra = jnp.full((x.shape[0], 1) + x.shape[2:], s, dtype=x.dtype)
    return jnp.concatenate([x, extra], axis=1)


if __name__ == "__main__":
    key = jax.random.PRNGKey(0)
    B, C, H, W = 2, 4, 16, 16
    x = jax.random.normal(key, (B, C, H, W), dtype=jnp.float32)
    ref = _reference(x, alpha=1e-8)

    # Default tiling (single 1024-lane tile for this small demo).
    out = jax.block_until_ready(minibatch_stddev(x, alpha=1e-8))
    assert out.shape == (B, C + 1, H, W)
    assert jnp.allclose(out, ref, atol=1e-5, rtol=1e-5), "mismatch vs reference (default tiling)"

    # Multi-tile path (8 grid steps) to exercise the cross-tile accumulator.
    out_mt = jax.block_until_ready(minibatch_stddev(x, alpha=1e-8, tile_n=128))
    assert jnp.allclose(out_mt, ref, atol=1e-5, rtol=1e-5), "mismatch vs reference (multi-tile)"

    # Non-128-aligned C*H*W to exercise the partial-last-tile / lane-mask path.
    x2 = jax.random.normal(jax.random.PRNGKey(1), (2, 3, 10, 10), dtype=jnp.float32)
    out2 = jax.block_until_ready(minibatch_stddev(x2, alpha=1e-8))
    assert out2.shape == (2, 4, 10, 10)
    assert jnp.allclose(out2, _reference(x2), atol=1e-5, rtol=1e-5), "mismatch vs reference (padded)"

    # Non-aligned AND multi-tile (3 tiles, last one partial).
    out3 = jax.block_until_ready(minibatch_stddev(x2, alpha=1e-8, tile_n=128))
    assert jnp.allclose(out3, _reference(x2), atol=1e-5, rtol=1e-5), "mismatch vs reference (partial multi-tile)"

    print("KERNEL_OK")
</pallas_src>

<mosaic_0001>
module attributes {stable_mosaic.version = 11 : i64} {
  func.func @_mbstd_kernel(%arg0: i32, %arg1: memref<2x1024xf32, #tpu.memory_space<vmem>>, %arg2: memref<1x1xf32, #tpu.memory_space<vmem>>, %arg3: memref<1x1024xf32, #tpu.memory_space<vmem>>) attributes {dimension_semantics = [#tpu.dimension_semantics<arbitrary>], iteration_bounds = array<i64: 1>, scalar_prefetch = 0 : i64, scratch_operands = 1 : i64, tpu.core_type = #tpu.core_type<tc>, window_params = [{transform_indices = @transform_0, window_bounds = array<i64: 2, 1024>}, {pipeline_mode = #tpu.pipeline_mode<synchronous>, transform_indices = @transform_1, window_bounds = array<i64: 1, 1>}]} {
    %c0_i32 = arith.constant 0 : i32
    %0 = arith.cmpi eq, %arg0, %c0_i32 : i32
    %1 = arith.extui %0 : i1 to i32
    %c0_i32_0 = arith.constant 0 : i32
    %2 = arith.cmpi ne, %1, %c0_i32_0 : i32
    scf.if %2 {
      %cst_14 = arith.constant 0.000000e+00 : f32
      %32 = vector.broadcast %cst_14 : f32 to vector<1x1024xf32>
      %c0_15 = arith.constant 0 : index
      %c0_16 = arith.constant 0 : index
      %33 = vector.load %arg3[%c0_15, %c0_16] : memref<1x1024xf32, #tpu.memory_space<vmem>>, vector<1x1024xf32>
      tpu.vector_store %arg3[%c0_15, %c0_16], %32 {strides = array<i32>} : memref<1x1024xf32, #tpu.memory_space<vmem>>, vector<1x1024xf32>,
    } else {
    }
    %c0 = arith.constant 0 : index
    %c0_1 = arith.constant 0 : index
    %3 = vector.load %arg1[%c0, %c0_1] : memref<2x1024xf32, #tpu.memory_space<vmem>>, vector<2x1024xf32>
    %cst = arith.constant dense<0.000000e+00> : vector<1024xf32>
    %4 = vector.multi_reduction <add>, %3, %cst [0] : vector<2x1024xf32> to vector<1024xf32>
    %5 = vector.shape_cast %4 : vector<1024xf32> to vector<1x1024xf32>
    %cst_2 = arith.constant 2.000000e+00 : f32
    %6 = vector.broadcast %cst_2 : f32 to vector<1x1024xf32>
    %7 = arith.divf %5, %6 : vector<1x1024xf32>
    %8 = vector.broadcast %7 : vector<1x1024xf32> to vector<2x1024xf32>
    %9 = arith.subf %3, %8 : vector<2x1024xf32>
    %10 = arith.mulf %9, %9 : vector<2x1024xf32>
    %cst_3 = arith.constant dense<0.000000e+00> : vector<1024xf32>
    %11 = vector.multi_reduction <add>, %10, %cst_3 [0] : vector<2x1024xf32> to vector<1024xf32>
    %12 = vector.shape_cast %11 : vector<1024xf32> to vector<1x1024xf32>
    %cst_4 = arith.constant 2.000000e+00 : f32
    %13 = vector.broadcast %cst_4 : f32 to vector<1x1024xf32>
    %14 = arith.divf %12, %13 : vector<1x1024xf32>
    %cst_5 = arith.constant 9.99999993E-9 : f32
    %15 = vector.broadcast %cst_5 : f32 to vector<1x1024xf32>
    %16 = arith.addf %14, %15 : vector<1x1024xf32>
    %17 = math.sqrt %16 : vector<1x1024xf32>
    %c1024_i32 = arith.constant 1024 : i32
    %18 = arith.muli %arg0, %c1024_i32 : i32
    %19 = tpu.iota {dimensions = array<i32: 1>} : vector<1x1024xi32>
    %20 = vector.broadcast %18 : i32 to vector<1x1024xi32>
    %21 = arith.addi %20, %19 : vector<1x1024xi32>
    %c1024_i32_6 = arith.constant 1024 : i32
    %22 = vector.broadcast %c1024_i32_6 : i32 to vector<1x1024xi32>
    %23 = arith.cmpi slt, %21, %22 : vector<1x1024xi32>
    %cst_7 = arith.constant 0.000000e+00 : f32
    %24 = vector.broadcast %cst_7 : f32 to vector<1x1024xf32>
    %25 = arith.select %23, %17, %24 : vector<1x1024xi1>, vector<1x1024xf32>
    %c0_8 = arith.constant 0 : index
    %c0_9 = arith.constant 0 : index
    %26 = vector.load %arg3[%c0_8, %c0_9] : memref<1x1024xf32, #tpu.memory_space<vmem>>, vector<1x1024xf32>
    %27 = arith.addf %26, %25 : vector<1x1024xf32>
    %c0_10 = arith.constant 0 : index
    %c0_11 = arith.constant 0 : index
    %28 = vector.load %arg3[%c0_10, %c0_11] : memref<1x1024xf32, #tpu.memory_space<vmem>>, vector<1x1024xf32>
    tpu.vector_store %arg3[%c0_10, %c0_11], %27 {strides = array<i32>} : memref<1x1024xf32, #tpu.memory_space<vmem>>, vector<1x1024xf32>,
    %c0_i32_12 = arith.constant 0 : i32
    %29 = arith.cmpi eq, %arg0, %c0_i32_12 : i32
    %30 = arith.extui %29 : i1 to i32
    %c0_i32_13 = arith.constant 0 : i32
    %31 = arith.cmpi ne, %30, %c0_i32_13 : i32
    scf.if %31 {
      %c0_14 = arith.constant 0 : index
      %c0_15 = arith.constant 0 : index
      %32 = vector.load %arg3[%c0_14, %c0_15] : memref<1x1024xf32, #tpu.memory_space<vmem>>, vector<1x1024xf32>
      %cst_16 = arith.constant dense<0.000000e+00> : vector<1xf32>
      %33 = vector.multi_reduction <add>, %32, %cst_16 [1] : vector<1x1024xf32> to vector<1xf32>
      %34 = vector.shape_cast %33 : vector<1xf32> to vector<1x1xf32>
      %cst_17 = arith.constant 9.765625E-4 : f32
      %35 = vector.broadcast %cst_17 : f32 to vector<1x1xf32>
      %36 = arith.mulf %34, %35 : vector<1x1xf32>
      %c0_18 = arith.constant 0 : index
      %c0_19 = arith.constant 0 : index
      %37 = vector.load %arg2[%c0_18, %c0_19] : memref<1x1xf32, #tpu.memory_space<vmem>>, vector<1x1xf32>
      tpu.vector_store %arg2[%c0_18, %c0_19], %36 {strides = array<i32>} : memref<1x1xf32, #tpu.memory_space<vmem>>, vector<1x1xf32>,
    } else {
    }
    return
  }
  func.func @transform_0(%arg0: i32) -> (i32, i32) {
    %c0_i32 = arith.constant 0 : i32
    %c0_i32_0 = arith.constant 0 : i32
    return %c0_i32, %arg0 : i32, i32
  }
  func.func @transform_1(%arg0: i32) -> (i32, i32) {
    %c0_i32 = arith.constant 0 : i32
    %c0_i32_0 = arith.constant 0 : i32
    %c0_i32_1 = arith.constant 0 : i32
    return %c0_i32, %c0_i32_0 : i32, i32
  }
}

</mosaic_0001>

<llo_original>
// kernel: tpu_custom_call.1
$region0: #{tpu_custom_call.1}
  #allocation0 [shape = 'u32[]', space=smem, size = 0x4, offset = 0x4, fixed_abs, tag = 'smem constant byte address 0x4 - core index']
  #allocation1 [shape = 'u32[144,128]{1,0:T(1,128)}', space=vmem, size = 0x12000, scoped, tag = 'internal scratch']
  #allocation2 [shape = 'f32[1,1024]{1,0:T(1,128)}', space=vmem, size = 0x1000, scoped, tag = 'scratch operand']
  %s0 = inlined_call_operand.hbm [shape: f32[2,1024], index: 0, kind: input, shape index: {}]
  %s1 = inlined_call_operand.hbm [shape: f32[1,1], index: 1, kind: output, shape index: {}]
  %s2 = sld [smem:[#allocation0]]
  $region26: #{tpu_custom_call.1} parent=0
    _
  %s4 = ssub.s32 1, %s2
  %s5 = scalar_select 0, %s4, %s2
  $region1: #{tpu_custom_call.1} parent=0
    #allocation3 [shape = 'u8[8192]{0}', space=vmem, size = 0x2000, scoped, tag = 'input window, operand 0, single buffered']
    #allocation4 [shape = 's32[1]{0}', space=sflag, size = 0x4, scoped, tag = 'scoped memory for tpu_custom_call.1']
    #allocation5 [shape = 's32[1]{0}', space=sflag, size = 0x4, scoped, tag = 'scoped memory for tpu_custom_call.1']
    #allocation6 [shape = 'u8[512]{0}', space=vmem, size = 0x400, scoped, tag = 'output window, operand 0, single buffered']
    %6 = vsyncpa [#allocation4], 0
    %7 = vsyncpa [#allocation5], 0
    // Predicated region
    $region2: #{tpu_custom_call.1} parent=1 // pred_check
      _
    $region3: #{tpu_custom_call.1} parent=1 // pred_check_branch
      %9 = sbr.rel (0) target = $region5
    $region4: #{tpu_custom_call.1} parent=1 // pred_region
      %s11 = ssub.s32 256, 256
      %12 = vsyncadd [#allocation4], %s11
      %s14 = sshll.u32 [#allocation3], 4
      %s15 = int_to_ptr.vmem [resolvable:$true] %s14
      %17 = dma.hbm_to_vmem [thread:$0]  %s0, 256, %s15, [#allocation4]
    $region5: #{tpu_custom_call.1} parent=1 // pred_fallthru
      _
    // Predicated region
    $region6: #{tpu_custom_call.1} parent=1 // pred_check
      _
    $region7: #{tpu_custom_call.1} parent=1 // pred_check_branch
      %19 = sbr.rel (0) target = $region9
    $region8: #{tpu_custom_call.1} parent=1 // pred_region
      %20 = dma.done [#allocation4], 256
    $region9: #{tpu_custom_call.1} parent=1 // pred_fallthru
      _
    %p21 = scmp.eq.s32.totalorder 0, 0
    // Predicated region
    $region10: #{tpu_custom_call.1} parent=1 // pred_check
      %p22 = pneg %p21
    $region11: #{tpu_custom_call.1} parent=1 // pred_check_branch
      %24 = sbr.rel (%p22) target = $region13
    $region12: #{tpu_custom_call.1} parent=1 // pred_region
      %25 = vst [vmem:[#allocation2] sm:$0xff] 0.0
    $region13: #{tpu_custom_call.1} parent=1 // pred_fallthru
      _
    %v26 = vld [vmem:[#allocation3] sm:$0xff]
    %v27 = vld [vmem:[#allocation3 + $0x8] sm:$0xff]
    %v30 = vcombine.high %v26, %v26
    %v32 = vunpack.c.l.s4 1983009808
    %v33 = vunpack.c.0.s8 %v32
    %v34 = vlaneseq
    %v35 = vshrl.u32 %v34, 7
    %v36 = vsub.s32 %v33, %v35
    %v37 = vrot.slane %v26, %v36
    %v39 = vunpack.c.l.s4 1983009808
    %v40 = vunpack.c.0.s8 %v39
    %v41 = vlaneseq
    %v42 = vshrl.u32 %v41, 7
    %v43 = vsub.s32 %v40, %v42
    %v44 = vrot.slane %v30, %v43
    %v45 = vcombine.high %v37, %v37
    %v46 = vcombine.high %v44, %v44
    %v47 = vcombine.high %v27, %v27
    %v49 = vunpack.c.l.s4 1983009808
    %v50 = vunpack.c.0.s8 %v49
    %v51 = vlaneseq
    %v52 = vshrl.u32 %v51, 7
    %v53 = vsub.s32 %v50, %v52
    %v54 = vrot.slane %v27, %v53
    %v56 = vunpack.c.l.s4 1983009808
    %v57 = vunpack.c.0.s8 %v56
    %v58 = vlaneseq
    %v59 = vshrl.u32 %v58, 7
    %v60 = vsub.s32 %v57, %v59
    %v61 = vrot.slane %v47, %v60
    %v62 = vcombine.high %v54, %v54
    %v63 = vcombine.high %v61, %v61
    %vm72 = vcmask 1041408
    %v73 = vsel %vm72, %v37, 0.0
    %v74 = vrot.slane %v73, 4
    %v75 = vadd.f32 %v73, %v74
    %v76 = vrot.slane %v75, 2
    %v77 = vadd.f32 %v75, %v76
    %v78 = vrot.slane %v77, 1
    %v79 = vadd.f32 %v77, %v78
    %v80 = vsel %vm72, %v45, 0.0
    %v81 = vrot.slane %v80, 4
    %v82 = vadd.f32 %v80, %v81
    %v83 = vrot.slane %v82, 2
    %v84 = vadd.f32 %v82, %v83
    %v85 = vrot.slane %v84, 1
    %v86 = vadd.f32 %v84, %v85
    %v87 = vsel %vm72, %v44, 0.0
    %v88 = vrot.slane %v87, 4
    %v89 = vadd.f32 %v87, %v88
    %v90 = vrot.slane %v89, 2
    %v91 = vadd.f32 %v89, %v90
    %v92 = vrot.slane %v91, 1
    %v93 = vadd.f32 %v91, %v92
    %v94 = vsel %vm72, %v46, 0.0
    %v95 = vrot.slane %v94, 4
    %v96 = vadd.f32 %v94, %v95
    %v97 = vrot.slane %v96, 2
    %v98 = vadd.f32 %v96, %v97
    %v99 = vrot.slane %v98, 1
    %v100 = vadd.f32 %v98, %v99
    %v101 = vsel %vm72, %v54, 0.0
    %v102 = vrot.slane %v101, 4
    %v103 = vadd.f32 %v101, %v102
    %v104 = vrot.slane %v103, 2
    %v105 = vadd.f32 %v103, %v104
    %v106 = vrot.slane %v105, 1
    %v107 = vadd.f32 %v105, %v106
    %v108 = vsel %vm72, %v62, 0.0
    %v109 = vrot.slane %v108, 4
    %v110 = vadd.f32 %v108, %v109
    %v111 = vrot.slane %v110, 2
    %v112 = vadd.f32 %v110, %v111
    %v113 = vrot.slane %v112, 1
    %v114 = vadd.f32 %v112, %v113
    %v115 = vsel %vm72, %v61, 0.0
    %v116 = vrot.slane %v115, 4
    %v117 = vadd.f32 %v115, %v116
    %v118 = vrot.slane %v117, 2
    %v119 = vadd.f32 %v117, %v118
    %v120 = vrot.slane %v119, 1
    %v121 = vadd.f32 %v119, %v120
    %v122 = vsel %vm72, %v63, 0.0
    %v123 = vrot.slane %v122, 4
    %v124 = vadd.f32 %v122, %v123
    %v125 = vrot.slane %v124, 2
    %v126 = vadd.f32 %v124, %v125
    %v127 = vrot.slane %v126, 1
    %v128 = vadd.f32 %v126, %v127
    %v129 = vrcp.pop 2.0
    %v130 = vmul.f32 %v79, %v129
    %v131 = vmul.f32 %v86, %v129
    %v132 = vmul.f32 %v93, %v129
    %v133 = vmul.f32 %v100, %v129
    %v134 = vmul.f32 %v107, %v129
    %v135 = vmul.f32 %v114, %v129
    %v136 = vmul.f32 %v121, %v129
    %v137 = vmul.f32 %v128, %v129
    %v146 = vcombine.low %v130, %v131
    %v147 = vcombine.low %v132, %v133
    %v149 = vunpack.c.l.s4 1983009808
    %v150 = vunpack.c.0.s8 %v149
    %v151 = vlaneseq
    %v152 = vshrl.u32 %v151, 7
    %v153 = vsub.s32 %v150, %v152
    %v154 = vrot.slane %v146, %v153
    %v156 = vunpack.c.l.s4 1983009808
    %v157 = vunpack.c.0.s8 %v156
    %v158 = vlaneseq
    %v159 = vshrl.u32 %v158, 7
    %v160 = vsub.s32 %v157, %v159
    %v161 = vrot.slane %v147, %v160
    %v162 = vcombine.low %v154, %v161
    %v163 = vcombine.low %v134, %v135
    %v164 = vcombine.low %v136, %v137
    %v166 = vunpack.c.l.s4 1983009808
    %v167 = vunpack.c.0.s8 %v166
    %v168 = vlaneseq
    %v169 = vshrl.u32 %v168, 7
    %v170 = vsub.s32 %v167, %v169
    %v171 = vrot.slane %v163, %v170
    %v173 = vunpack.c.l.s4 1983009808
    %v174 = vunpack.c.0.s8 %v173
    %v175 = vlaneseq
    %v176 = vshrl.u32 %v175, 7
    %v177 = vsub.s32 %v174, %v176
    %v178 = vrot.slane %v164, %v177
    %v179 = vcombine.low %v171, %v178
    %v182 = vsub.f32 %v26, %v162
    %v183 = vsub.f32 %v27, %v179
    %v184 = vmul.f32 %v182, %v182
    %v185 = vmul.f32 %v183, %v183
    %v188 = vcombine.high %v184, %v184
    %v190 = vunpack.c.l.s4 1983009808
    %v191 = vunpack.c.0.s8 %v190
    %v192 = vlaneseq
    %v193 = vshrl.u32 %v192, 7
    %v194 = vsub.s32 %v191, %v193
    %v195 = vrot.slane %v184, %v194
    %v197 = vunpack.c.l.s4 1983009808
    %v198 = vunpack.c.0.s8 %v197
    %v199 = vlaneseq
    %v200 = vshrl.u32 %v199, 7
    %v201 = vsub.s32 %v198, %v200
    %v202 = vrot.slane %v188, %v201
    %v203 = vcombine.high %v195, %v195
    %v204 = vcombine.high %v202, %v202
    %v205 = vcombine.high %v185, %v185
    %v207 = vunpack.c.l.s4 1983009808
    %v208 = vunpack.c.0.s8 %v207
    %v209 = vlaneseq
    %v210 = vshrl.u32 %v209, 7
    %v211 = vsub.s32 %v208, %v210
    %v212 = vrot.slane %v185, %v211
    %v214 = vunpack.c.l.s4 1983009808
    %v215 = vunpack.c.0.s8 %v214
    %v216 = vlaneseq
    %v217 = vshrl.u32 %v216, 7
    %v218 = vsub.s32 %v215, %v217
    %v219 = vrot.slane %v205, %v218
    %v220 = vcombine.high %v212, %v212
    %v221 = vcombine.high %v219, %v219
    %v230 = vsel %vm72, %v195, 0.0
    %v231 = vrot.slane %v230, 4
    %v232 = vadd.f32 %v230, %v231
    %v233 = vrot.slane %v232, 2
    %v234 = vadd.f32 %v232, %v233
    %v235 = vrot.slane %v234, 1
    %v236 = vadd.f32 %v234, %v235
    %v237 = vsel %vm72, %v203, 0.0
    %v238 = vrot.slane %v237, 4
    %v239 = vadd.f32 %v237, %v238
    %v240 = vrot.slane %v239, 2
    %v241 = vadd.f32 %v239, %v240
    %v242 = vrot.slane %v241, 1
    %v243 = vadd.f32 %v241, %v242
    %v244 = vsel %vm72, %v202, 0.0
    %v245 = vrot.slane %v244, 4
    %v246 = vadd.f32 %v244, %v245
    %v247 = vrot.slane %v246, 2
    %v248 = vadd.f32 %v246, %v247
    %v249 = vrot.slane %v248, 1
    %v250 = vadd.f32 %v248, %v249
    %v251 = vsel %vm72, %v204, 0.0
    %v252 = vrot.slane %v251, 4
    %v253 = vadd.f32 %v251, %v252
    %v254 = vrot.slane %v253, 2
    %v255 = vadd.f32 %v253, %v254
    %v256 = vrot.slane %v255, 1
    %v257 = vadd.f32 %v255, %v256
    %v258 = vsel %vm72, %v212, 0.0
    %v259 = vrot.slane %v258, 4
    %v260 = vadd.f32 %v258, %v259
    %v261 = vrot.slane %v260, 2
    %v262 = vadd.f32 %v260, %v261
    %v263 = vrot.slane %v262, 1
    %v264 = vadd.f32 %v262, %v263
    %v265 = vsel %vm72, %v220, 0.0
    %v266 = vrot.slane %v265, 4
    %v267 = vadd.f32 %v265, %v266
    %v268 = vrot.slane %v267, 2
    %v269 = vadd.f32 %v267, %v268
    %v270 = vrot.slane %v269, 1
    %v271 = vadd.f32 %v269, %v270
    %v272 = vsel %vm72, %v219, 0.0
    %v273 = vrot.slane %v272, 4
    %v274 = vadd.f32 %v272, %v273
    %v275 = vrot.slane %v274, 2
    %v276 = vadd.f32 %v274, %v275
    %v277 = vrot.slane %v276, 1
    %v278 = vadd.f32 %v276, %v277
    %v279 = vsel %vm72, %v221, 0.0
    %v280 = vrot.slane %v279, 4
    %v281 = vadd.f32 %v279, %v280
    %v282 = vrot.slane %v281, 2
    %v283 = vadd.f32 %v281, %v282
    %v284 = vrot.slane %v283, 1
    %v285 = vadd.f32 %v283, %v284
    %v286 = vmul.f32 %v236, %v129
    %v287 = vmul.f32 %v243, %v129
    %v288 = vmul.f32 %v250, %v129
    %v289 = vmul.f32 %v257, %v129
    %v290 = vmul.f32 %v264, %v129
    %v291 = vmul.f32 %v271, %v129
    %v292 = vmul.f32 %v278, %v129
    %v293 = vmul.f32 %v285, %v129
    %v294 = vadd.f32 %v286, 1e-08
    %v295 = vadd.f32 %v287, 1e-08
    %v296 = vadd.f32 %v288, 1e-08
    %v297 = vadd.f32 %v289, 1e-08
    %v298 = vadd.f32 %v290, 1e-08
    %v299 = vadd.f32 %v291, 1e-08
    %v300 = vadd.f32 %v292, 1e-08
    %v301 = vadd.f32 %v293, 1e-08
    %v302 = vrsqrt.pop %v294
    %v303 = vmul.f32 %v294, %v302
    %vm304 = vcmp.eq.f32.partialorder %v294, inf
    %v305 = vsel %vm304, %v294, %v303
    %vm306 = vcmp.eq.f32.partialorder %v294, 0.0
    %v307 = vand.u32 %v294, 2147483648
    %v308 = vsel %vm306, %v307, %v305
    %v309 = vrsqrt.pop %v295
    %v310 = vmul.f32 %v295, %v309
    %vm311 = vcmp.eq.f32.partialorder %v295, inf
    %v312 = vsel %vm311, %v295, %v310
    %vm313 = vcmp.eq.f32.partialorder %v295, 0.0
    %v314 = vand.u32 %v295, 2147483648
    %v315 = vsel %vm313, %v314, %v312
    %v316 = vrsqrt.pop %v296
    %v317 = vmul.f32 %v296, %v316
    %vm318 = vcmp.eq.f32.partialorder %v296, inf
    %v319 = vsel %vm318, %v296, %v317
    %vm320 = vcmp.eq.f32.partialorder %v296, 0.0
    %v321 = vand.u32 %v296, 2147483648
    %v322 = vsel %vm320, %v321, %v319
    %v323 = vrsqrt.pop %v297
    %v324 = vmul.f32 %v297, %v323
    %vm325 = vcmp.eq.f32.partialorder %v297, inf
    %v326 = vsel %vm325, %v297, %v324
    %vm327 = vcmp.eq.f32.partialorder %v297, 0.0
    %v328 = vand.u32 %v297, 2147483648
    %v329 = vsel %vm327, %v328, %v326
    %v330 = vrsqrt.pop %v298
    %v331 = vmul.f32 %v298, %v330
    %vm332 = vcmp.eq.f32.partialorder %v298, inf
    %v333 = vsel %vm332, %v298, %v331
    %vm334 = vcmp.eq.f32.partialorder %v298, 0.0
    %v335 = vand.u32 %v298, 2147483648
    %v336 = vsel %vm334, %v335, %v333
    %v337 = vrsqrt.pop %v299
    %v338 = vmul.f32 %v299, %v337
    %vm339 = vcmp.eq.f32.partialorder %v299, inf
    %v340 = vsel %vm339, %v299, %v338
    %vm341 = vcmp.eq.f32.partialorder %v299, 0.0
    %v342 = vand.u32 %v299, 2147483648
    %v343 = vsel %vm341, %v342, %v340
    %v344 = vrsqrt.pop %v300
    %v345 = vmul.f32 %v300, %v344
    %vm346 = vcmp.eq.f32.partialorder %v300, inf
    %v347 = vsel %vm346, %v300, %v345
    %vm348 = vcmp.eq.f32.partialorder %v300, 0.0
    %v349 = vand.u32 %v300, 2147483648
    %v350 = vsel %vm348, %v349, %v347
    %v351 = vrsqrt.pop %v301
    %v352 = vmul.f32 %v301, %v351
    %vm353 = vcmp.eq.f32.partialorder %v301, inf
    %v354 = vsel %vm353, %v301, %v352
    %vm355 = vcmp.eq.f32.partialorder %v301, 0.0
    %v356 = vand.u32 %v301, 2147483648
    %v357 = vsel %vm355, %v356, %v354
    %s358 = smul.u32 0, 1024
    %v359 = vlaneseq
    %v360 = vand.u32 %v359, 127
    %v361 = vadd.s32 %v360, 128
    %v362 = vadd.s32 %v360, 256
    %v363 = vadd.s32 %v360, 384
    %v364 = vadd.s32 %v360, 512
    %v365 = vadd.s32 %v360, 640
    %v366 = vadd.s32 %v360, 768
    %v367 = vadd.s32 %v360, 896
    %v368 = vstv %s358
    %v369 = vadd.s32 %v368, %v360
    %v370 = vadd.s32 %v368, %v361
    %v371 = vadd.s32 %v368, %v362
    %v372 = vadd.s32 %v368, %v363
    %v373 = vadd.s32 %v368, %v364
    %v374 = vadd.s32 %v368, %v365
    %v375 = vadd.s32 %v368, %v366
    %v376 = vadd.s32 %v368, %v367
    %vm377 = vcmp.lt.s32.totalorder %v369, 1024
    %vm378 = vcmp.lt.s32.totalorder %v370, 1024
    %vm379 = vcmp.lt.s32.totalorder %v371, 1024
    %vm380 = vcmp.lt.s32.totalorder %v372, 1024
    %vm381 = vcmp.lt.s32.totalorder %v373, 1024
    %vm382 = vcmp.lt.s32.totalorder %v374, 1024
    %vm383 = vcmp.lt.s32.totalorder %v375, 1024
    %vm384 = vcmp.lt.s32.totalorder %v376, 1024
    %v385 = vsel %vm377, %v308, 0.0
    %v386 = vsel %vm378, %v315, 0.0
    %v387 = vsel %vm379, %v322, 0.0
    %v388 = vsel %vm380, %v329, 0.0
    %v389 = vsel %vm381, %v336, 0.0
    %v390 = vsel %vm382, %v343, 0.0
    %v391 = vsel %vm383, %v350, 0.0
    %v392 = vsel %vm384, %v357, 0.0
    %v393 = vld [vmem:[#allocation2] sm:$0xff]
    %v402 = vcombine.low %v385, %v386
    %v403 = vcombine.low %v387, %v388
    %v404 = vcombine.low %v389, %v390
    %v405 = vcombine.low %v391, %v392
    %v407 = vunpack.c.l.s4 1966171168
    %v408 = vunpack.c.0.s8 %v407
    %v409 = vlaneseq
    %v410 = vshrl.u32 %v409, 7
    %v411 = vsub.s32 %v408, %v410
    %v412 = vrot.slane %v402, %v411
    %v414 = vunpack.c.l.s4 1966171168
    %v415 = vunpack.c.0.s8 %v414
    %v416 = vlaneseq
    %v417 = vshrl.u32 %v416, 7
    %v418 = vsub.s32 %v415, %v417
    %v419 = vrot.slane %v403, %v418
    %v421 = vunpack.c.l.s4 1966171168
    %v422 = vunpack.c.0.s8 %v421
    %v423 = vlaneseq
    %v424 = vshrl.u32 %v423, 7
    %v425 = vsub.s32 %v422, %v424
    %v426 = vrot.slane %v404, %v425
    %v428 = vunpack.c.l.s4 1966171168
    %v429 = vunpack.c.0.s8 %v428
    %v430 = vlaneseq
    %v431 = vshrl.u32 %v430, 7
    %v432 = vsub.s32 %v429, %v431
    %v433 = vrot.slane %v405, %v432
    %v434 = vcombine.low %v412, %v419
    %v435 = vcombine.low %v426, %v433
    %v437 = vunpack.c.l.s4 1966171168
    %v438 = vunpack.c.0.s8 %v437
    %v439 = vlaneseq
    %v440 = vshrl.u32 %v439, 7
    %v441 = vsub.s32 %v438, %v440
    %v442 = vrot.slane %v434, %v441
    %v444 = vunpack.c.l.s4 1966171168
    %v445 = vunpack.c.0.s8 %v444
    %v446 = vlaneseq
    %v447 = vshrl.u32 %v446, 7
    %v448 = vsub.s32 %v445, %v447
    %v449 = vrot.slane %v435, %v448
    %v450 = vcombine.low %v442, %v449
    %v452 = vadd.f32 %v393, %v450
    %453 = vst [vmem:[#allocation2] sm:$0xff] %v452
    // Predicated region
    $region14: #{tpu_custom_call.1} parent=1 // pred_check
      %p454 = pneg %p21
    $region15: #{tpu_custom_call.1} parent=1 // pred_check_branch
      %456 = sbr.rel (%p454) target = $region17
    $region16: #{tpu_custom_call.1} parent=1 // pred_region
      %v457 = vld [vmem:[#allocation2] sm:$0xff]
      %v459 = vlaneseq
      %v460 = vshrl.u32 %v459, 7
      %v461 = vsub.s32 0, %v460
      %v462 = vrot.slane %v457, %v461
      %v463 = vlaneseq
      %v464 = vshrl.u32 %v463, 7
      %v465 = vsub.s32 1, %v464
      %v466 = vrot.slane %v457, %v465
      %v467 = vlaneseq
      %v468 = vshrl.u32 %v467, 7
      %v469 = vsub.s32 2, %v468
      %v470 = vrot.slane %v457, %v469
      %v471 = vlaneseq
      %v472 = vshrl.u32 %v471, 7
      %v473 = vsub.s32 3, %v472
      %v474 = vrot.slane %v457, %v473
      %v475 = vlaneseq
      %v476 = vshrl.u32 %v475, 7
      %v477 = vsub.s32 4, %v476
      %v478 = vrot.slane %v457, %v477
      %v479 = vlaneseq
      %v480 = vshrl.u32 %v479, 7
      %v481 = vsub.s32 5, %v480
      %v482 = vrot.slane %v457, %v481
      %v483 = vlaneseq
      %v484 = vshrl.u32 %v483, 7
      %v485 = vsub.s32 6, %v484
      %v486 = vrot.slane %v457, %v485
      %v487 = vlaneseq
      %v488 = vshrl.u32 %v487, 7
      %v489 = vsub.s32 7, %v488
      %v490 = vrot.slane %v457, %v489
      %vm499 = vcmask 1040384
      %v500 = vsel %vm499, %v462, 0.0
      %v501 = vsel %vm499, %v466, 0.0
      %v502 = vadd.f32 %v500, %v501
      %v503 = vsel %vm499, %v470, 0.0
      %v504 = vadd.f32 %v502, %v503
      %v505 = vsel %vm499, %v474, 0.0
      %v506 = vadd.f32 %v504, %v505
      %v507 = vsel %vm499, %v478, 0.0
      %v508 = vadd.f32 %v506, %v507
      %v509 = vsel %vm499, %v482, 0.0
      %v510 = vadd.f32 %v508, %v509
      %v511 = vsel %vm499, %v486, 0.0
      %v512 = vadd.f32 %v510, %v511
      %v513 = vsel %vm499, %v490, 0.0
      %v514 = vadd.f32 %v512, %v513
      %515 = vadd.xlane.f32.xlu0 %v514
      %v516 = vpop.xlane.xlu0 %515
      %v517 = vmul.f32 %v516, 0.0009765625
      %vm518 = vcmask 0
      %519 = vst.msk [vmem:[#allocation6] sm:$0x1] %vm518, %v517
    $region17: #{tpu_custom_call.1} parent=1 // pred_fallthru
      _
    // Predicated region
    $region18: #{tpu_custom_call.1} parent=1 // pred_check
      _
    $region19: #{tpu_custom_call.1} parent=1 // pred_check_branch
      %521 = sbr.rel (0) target = $region21
    $region20: #{tpu_custom_call.1} parent=1 // pred_region
      %s523 = ssub.s32 16, 16
      %524 = vsyncadd [#allocation5], %s523
      %s526 = sshll.u32 [#allocation6], 4
      %s527 = int_to_ptr.vmem [resolvable:$true] %s526
      %529 = dma.vmem_to_hbm [thread:$0]  %s527, 16, %s1, [#allocation5]
    $region21: #{tpu_custom_call.1} parent=1 // pred_fallthru
      _
    // Predicated region
    $region22: #{tpu_custom_call.1} parent=1 // pred_check
      _
    $region23: #{tpu_custom_call.1} parent=1 // pred_check_branch
      %531 = sbr.rel (0) target = $region25
    $region24: #{tpu_custom_call.1} parent=1 // pred_region
      %532 = dma.done [#allocation5], 16
    $region25: #{tpu_custom_call.1} parent=1 // pred_fallthru
      _
    %533 = vsyncpa [#allocation4], 1
    %534 = vsyncpa [#allocation5], 1

</llo_original>
